<compile_context>
chip_gen: v5e
topology: v5e:2x2
jax: 0.10.0
libtpu: 0.0.40
codegen_flags: <defaults>
</compile_context>

<pallas_src>
import jax
import jax.numpy as jnp
from jax import lax
from jax.experimental import pallas as pl
from jax.experimental.pallas import tpu as pltpu


def _round_up(x, m):
    return ((x + m - 1) // m) * m


def _largest_divisor_leq(n, k):
    k = max(1, min(int(k), int(n)))
    for d in range(k, 0, -1):
        if n % d == 0:
            return d
    return 1


def _conv1x1_kernel_vpu(x_ref, w_ref, b_ref, o_ref):
    # Tiny-channel path (C*O <= 64): the MXU would be essentially idle, so do
    # the contraction as C fused broadcast multiply-adds on the VPU.
    # x_ref: (bn, C, TM), w_ref: (O, C), b_ref: (O, 1), o_ref: (bn, O, TM)
    w = w_ref[...].astype(jnp.float32)        # hoisted out of the batch loop
    bvec = b_ref[...].astype(jnp.float32)     # (O, 1) lane-broadcast bias
    bn = x_ref.shape[0]
    C = x_ref.shape[1]

    def one(i):
        x = x_ref[i].astype(jnp.float32)      # (C, TM)
        acc = bvec + w[:, 0:1] * x[0:1, :]
        for c in range(1, C):                 # static unroll, C is small here
            acc = acc + w[:, c:c + 1] * x[c:c + 1, :]
        o_ref[i] = acc.astype(o_ref.dtype)

    if bn <= 4:
        for i in range(bn):
            one(i)
    else:
        def body(i, carry):
            one(i)
            return carry
        lax.fori_loop(0, bn, body, 0)


def _conv1x1_kernel_mxu(x_ref, w_ref, b_ref, o_ref):
    # General path: per sub-batch (O, C) @ (C, TM) on the MXU, f32 accumulate,
    # bias folded into the epilogue store.
    # x_ref: (bn, C, TM), w_ref: (O, C), b_ref: (O, 1), o_ref: (bn, O, TM)
    w = w_ref[...]
    bvec = b_ref[...].astype(jnp.float32)
    bn = x_ref.shape[0]

    def one(i):
        acc = jnp.dot(w, x_ref[i], preferred_element_type=jnp.float32)
        o_ref[i] = (acc + bvec).astype(o_ref.dtype)

    if bn <= 4:
        for i in range(bn):
            one(i)
    else:
        def body(i, carry):
            one(i)
            return carry
        lax.fori_loop(0, bn, body, 0)


def fully_conv_layer(x, weight, bias, *, target_tile_bytes=2 * 1024 * 1024):
    """1x1 Conv2d forward (FullyConvLayer).

    x:      (N, C, H, W)  float32
    weight: (O, C, 1, 1)  float32  (PyTorch Conv2d weight shape)
    bias:   (O,)          float32
    returns (N, O, H, W)  float32
    """
    N, C, H, W = x.shape
    O = weight.shape[0]
    HW = H * W

    # Free reshapes only — no transposes, no extra HBM passes.
    x3 = x.reshape(N, C, HW)
    w_mat = weight.reshape(O, C)
    b_mat = bias.reshape(O, 1)

    dt_bytes = 4  # f32 throughout

    # ---- generation-aware VMEM budget ------------------------------------
    try:
        vmem_cap = int(pltpu.get_tpu_info().vmem_capacity_bytes)
    except Exception:  # no TPU info available: assume the smallest (v7x) VMEM
        vmem_cap = 64 * 1024 * 1024
    budget = (vmem_cap * 3) // 4          # ~48 MiB on v7x, ~96 MiB on v5e/v6e
    headroom = 4 * 1024 * 1024            # temporaries / compiler slack
    resident = 2 * (O * C + O) * dt_bytes  # (double-buffered) weight + bias
    avail = max(0, budget - resident - headroom)

    # ---- spatial tile: sized by bytes, lane-aligned, no wrapper pad -------
    HW_lane = _round_up(HW, 128)
    per_lane_bytes = (C + O) * dt_bytes   # x tile + y tile bytes per lane
    tm_desired = _round_up(max(1, target_tile_bytes // per_lane_bytes), 128)
    tm_budget = max(128, (avail // (2 * per_lane_bytes)) // 128 * 128)
    tm = min(tm_desired, HW_lane, tm_budget)
    tm = max(tm, min(512, HW_lane, tm_budget))   # amortize per-step overhead
    if tm >= HW:
        tm = HW     # single full-extent spatial block (always a legal block)
    # else: tm is a multiple of 128; Pallas masks the partial last block.

    # ---- batch folding so small images still move MiB-scale DMA per step --
    per_step_bytes = per_lane_bytes * tm
    bn_budget = max(1, avail // (2 * per_step_bytes))
    bn_desired = max(1, target_tile_bytes // per_step_bytes)
    bn = _largest_divisor_leq(N, min(bn_desired, bn_budget, N, 32))

    # Real allocation: double-buffered x/y tiles + resident params + headroom.
    vmem_limit = int(max(16 * 1024 * 1024,
                         min(budget,
                             2 * bn * per_step_bytes + resident + headroom)))

    # Tiny-channel shapes go to the VPU; everything else uses the MXU.
    kernel = _conv1x1_kernel_vpu if (C * O <= 64) else _conv1x1_kernel_mxu

    grid = (N // bn, pl.cdiv(HW, tm))

    y3 = pl.pallas_call(
        kernel,
        out_shape=jax.ShapeDtypeStruct((N, O, HW), x.dtype),
        grid_spec=pltpu.PrefetchScalarGridSpec(
            num_scalar_prefetch=0,
            grid=grid,
            in_specs=[
                # Activations: bn batch elements, all channels, a lane-dense
                # spatial tile.
                pl.BlockSpec((bn, C, tm), lambda n, j: (n, 0, j)),
                # Weight and bias are grid-invariant (resident in VMEM).
                pl.BlockSpec((O, C), lambda n, j: (0, 0)),
                pl.BlockSpec((O, 1), lambda n, j: (0, 0)),
            ],
            # Lane-dense output tile: unmasked stores except the (optional)
            # partial last spatial block.
            out_specs=pl.BlockSpec((bn, O, tm), lambda n, j: (n, 0, j)),
        ),
        compiler_params=pltpu.CompilerParams(
            dimension_semantics=("parallel", "parallel"),
            vmem_limit_bytes=vmem_limit,
        ),
    )(x3, w_mat, b_mat)

    return y3.reshape(N, O, H, W)


def _reference(x, weight, bias):
    # Pure-JAX reference of the 1x1 conv for correctness checks.
    w = weight.reshape(weight.shape[0], weight.shape[1])  # (O, C)
    y = jnp.einsum("nchw,oc->nohw", x, w)
    return y + bias[None, :, None, None]


if __name__ == "__main__":
    key = jax.random.PRNGKey(0)
    k_x, k_w, k_b = jax.random.split(key, 3)

    # Small shapes consistent with the module's forward: NCHW input.
    N, C, H, W = 2, 4, 16, 16
    out_dim = 8

    x = jax.random.normal(k_x, (N, C, H, W), dtype=jnp.float32)
    weight = jax.random.normal(k_w, (out_dim, C, 1, 1), dtype=jnp.float32) * 0.1
    bias = jax.random.normal(k_b, (out_dim,), dtype=jnp.float32) * 0.1

    y = jax.block_until_ready(fully_conv_layer(x, weight, bias))
    assert y.shape == (N, out_dim, H, W)
    assert jnp.allclose(y, _reference(x, weight, bias), atol=1e-5, rtol=1e-5), \
        "mismatch vs reference (VPU path)"

    # Non-128-divisible (and <128) spatial extent + batch-folding path.
    H2, W2 = 9, 13
    x2 = jax.random.normal(k_x, (N, C, H2, W2), dtype=jnp.float32)
    y2 = jax.block_until_ready(fully_conv_layer(x2, weight, bias))
    assert jnp.allclose(y2, _reference(x2, weight, bias), atol=1e-5, rtol=1e-5), \
        "mismatch vs reference (tiny-spatial path)"

    # Larger channel counts exercise the MXU path.
    C3, O3 = 32, 64
    x3 = jax.random.normal(k_x, (N, C3, H, W), dtype=jnp.float32)
    w3 = jax.random.normal(k_w, (O3, C3, 1, 1), dtype=jnp.float32) * 0.1
    b3 = jax.random.normal(k_b, (O3,), dtype=jnp.float32) * 0.1
    y3 = jax.block_until_ready(fully_conv_layer(x3, w3, b3))
    assert jnp.allclose(y3, _reference(x3, w3, b3), atol=1e-4, rtol=1e-4), \
        "mismatch vs reference (MXU path)"

    # Force a small spatial tile so the masked partial last block is exercised.
    H4, W4 = 40, 37   # HW = 1480 -> one full 1408-lane block + one partial
    x4 = jax.random.normal(k_x, (N, C, H4, W4), dtype=jnp.float32)
    y4 = jax.block_until_ready(
        fully_conv_layer(x4, weight, bias, target_tile_bytes=64 * 1024))
    assert jnp.allclose(y4, _reference(x4, weight, bias), atol=1e-5, rtol=1e-5), \
        "mismatch vs reference (partial-tile path)"

    print("KERNEL_OK")
</pallas_src>

<mosaic_0001>
module attributes {stable_mosaic.version = 11 : i64} {
  func.func @_conv1x1_kernel_vpu(%arg0: i32, %arg1: i32, %arg2: memref<2x4x256xf32, #tpu.memory_space<vmem>>, %arg3: memref<8x4xf32, #tpu.memory_space<vmem>>, %arg4: memref<8x1xf32, #tpu.memory_space<vmem>>, %arg5: memref<2x8x256xf32, #tpu.memory_space<vmem>>) attributes {dimension_semantics = [#tpu.dimension_semantics<parallel>, #tpu.dimension_semantics<parallel>], iteration_bounds = array<i64: 1, 1>, scalar_prefetch = 0 : i64, scratch_operands = 0 : i64, tpu.core_type = #tpu.core_type<tc>, window_params = [{transform_indices = @transform_0, window_bounds = array<i64: 2, 4, 256>}, {pipeline_mode = #tpu.pipeline_mode<synchronous>, transform_indices = @transform_1, window_bounds = array<i64: 8, 4>}, {pipeline_mode = #tpu.pipeline_mode<synchronous>, transform_indices = @transform_2, window_bounds = array<i64: 8, 1>}, {transform_indices = @transform_3, window_bounds = array<i64: 2, 8, 256>}]} {
    %c0 = arith.constant 0 : index
    %c0_0 = arith.constant 0 : index
    %0 = vector.load %arg3[%c0, %c0_0] : memref<8x4xf32, #tpu.memory_space<vmem>>, vector<8x4xf32>
    %c0_1 = arith.constant 0 : index
    %c0_2 = arith.constant 0 : index
    %1 = vector.load %arg4[%c0_1, %c0_2] : memref<8x1xf32, #tpu.memory_space<vmem>>, vector<8x1xf32>
    %c0_3 = arith.constant 0 : index
    %c0_4 = arith.constant 0 : index
    %c0_5 = arith.constant 0 : index
    %2 = vector.load %arg2[%c0_3, %c0_4, %c0_5] : memref<2x4x256xf32, #tpu.memory_space<vmem>>, vector<1x4x256xf32>
    %3 = vector.shape_cast %2 : vector<1x4x256xf32> to vector<4x256xf32>
    %4 = vector.extract_strided_slice %0 {offsets = [0, 0], sizes = [8, 1], strides = [1, 1]} : vector<8x4xf32> to vector<8x1xf32>
    %5 = vector.extract_strided_slice %3 {offsets = [0, 0], sizes = [1, 256], strides = [1, 1]} : vector<4x256xf32> to vector<1x256xf32>
    %6 = vector.broadcast %4 : vector<8x1xf32> to vector<8x256xf32>
    %7 = vector.broadcast %5 : vector<1x256xf32> to vector<8x256xf32>
    %8 = arith.mulf %6, %7 : vector<8x256xf32>
    %9 = vector.broadcast %1 : vector<8x1xf32> to vector<8x256xf32>
    %10 = arith.addf %9, %8 : vector<8x256xf32>
    %11 = vector.extract_strided_slice %0 {offsets = [0, 1], sizes = [8, 1], strides = [1, 1]} : vector<8x4xf32> to vector<8x1xf32>
    %12 = vector.extract_strided_slice %3 {offsets = [1, 0], sizes = [1, 256], strides = [1, 1]} : vector<4x256xf32> to vector<1x256xf32>
    %13 = vector.broadcast %11 : vector<8x1xf32> to vector<8x256xf32>
    %14 = vector.broadcast %12 : vector<1x256xf32> to vector<8x256xf32>
    %15 = arith.mulf %13, %14 : vector<8x256xf32>
    %16 = arith.addf %10, %15 : vector<8x256xf32>
    %17 = vector.extract_strided_slice %0 {offsets = [0, 2], sizes = [8, 1], strides = [1, 1]} : vector<8x4xf32> to vector<8x1xf32>
    %18 = vector.extract_strided_slice %3 {offsets = [2, 0], sizes = [1, 256], strides = [1, 1]} : vector<4x256xf32> to vector<1x256xf32>
    %19 = vector.broadcast %17 : vector<8x1xf32> to vector<8x256xf32>
    %20 = vector.broadcast %18 : vector<1x256xf32> to vector<8x256xf32>
    %21 = arith.mulf %19, %20 : vector<8x256xf32>
    %22 = arith.addf %16, %21 : vector<8x256xf32>
    %23 = vector.extract_strided_slice %0 {offsets = [0, 3], sizes = [8, 1], strides = [1, 1]} : vector<8x4xf32> to vector<8x1xf32>
    %24 = vector.extract_strided_slice %3 {offsets = [3, 0], sizes = [1, 256], strides = [1, 1]} : vector<4x256xf32> to vector<1x256xf32>
    %25 = vector.broadcast %23 : vector<8x1xf32> to vector<8x256xf32>
    %26 = vector.broadcast %24 : vector<1x256xf32> to vector<8x256xf32>
    %27 = arith.mulf %25, %26 : vector<8x256xf32>
    %28 = arith.addf %22, %27 : vector<8x256xf32>
    %c0_6 = arith.constant 0 : index
    %c0_7 = arith.constant 0 : index
    %c0_8 = arith.constant 0 : index
    %29 = vector.load %arg5[%c0_6, %c0_7, %c0_8] : memref<2x8x256xf32, #tpu.memory_space<vmem>>, vector<1x8x256xf32>
    %30 = vector.shape_cast %29 : vector<1x8x256xf32> to vector<8x256xf32>
    %31 = vector.shape_cast %28 : vector<8x256xf32> to vector<1x8x256xf32>
    tpu.vector_store %arg5[%c0_6, %c0_7, %c0_8], %31 {strides = array<i32>} : memref<2x8x256xf32, #tpu.memory_space<vmem>>, vector<1x8x256xf32>,
    %c1 = arith.constant 1 : index
    %c0_9 = arith.constant 0 : index
    %c0_10 = arith.constant 0 : index
    %32 = vector.load %arg2[%c1, %c0_9, %c0_10] : memref<2x4x256xf32, #tpu.memory_space<vmem>>, vector<1x4x256xf32>
    %33 = vector.shape_cast %32 : vector<1x4x256xf32> to vector<4x256xf32>
    %34 = vector.extract_strided_slice %0 {offsets = [0, 0], sizes = [8, 1], strides = [1, 1]} : vector<8x4xf32> to vector<8x1xf32>
    %35 = vector.extract_strided_slice %33 {offsets = [0, 0], sizes = [1, 256], strides = [1, 1]} : vector<4x256xf32> to vector<1x256xf32>
    %36 = vector.broadcast %34 : vector<8x1xf32> to vector<8x256xf32>
    %37 = vector.broadcast %35 : vector<1x256xf32> to vector<8x256xf32>
    %38 = arith.mulf %36, %37 : vector<8x256xf32>
    %39 = vector.broadcast %1 : vector<8x1xf32> to vector<8x256xf32>
    %40 = arith.addf %39, %38 : vector<8x256xf32>
    %41 = vector.extract_strided_slice %0 {offsets = [0, 1], sizes = [8, 1], strides = [1, 1]} : vector<8x4xf32> to vector<8x1xf32>
    %42 = vector.extract_strided_slice %33 {offsets = [1, 0], sizes = [1, 256], strides = [1, 1]} : vector<4x256xf32> to vector<1x256xf32>
    %43 = vector.broadcast %41 : vector<8x1xf32> to vector<8x256xf32>
    %44 = vector.broadcast %42 : vector<1x256xf32> to vector<8x256xf32>
    %45 = arith.mulf %43, %44 : vector<8x256xf32>
    %46 = arith.addf %40, %45 : vector<8x256xf32>
    %47 = vector.extract_strided_slice %0 {offsets = [0, 2], sizes = [8, 1], strides = [1, 1]} : vector<8x4xf32> to vector<8x1xf32>
    %48 = vector.extract_strided_slice %33 {offsets = [2, 0], sizes = [1, 256], strides = [1, 1]} : vector<4x256xf32> to vector<1x256xf32>
    %49 = vector.broadcast %47 : vector<8x1xf32> to vector<8x256xf32>
    %50 = vector.broadcast %48 : vector<1x256xf32> to vector<8x256xf32>
    %51 = arith.mulf %49, %50 : vector<8x256xf32>
    %52 = arith.addf %46, %51 : vector<8x256xf32>
    %53 = vector.extract_strided_slice %0 {offsets = [0, 3], sizes = [8, 1], strides = [1, 1]} : vector<8x4xf32> to vector<8x1xf32>
    %54 = vector.extract_strided_slice %33 {offsets = [3, 0], sizes = [1, 256], strides = [1, 1]} : vector<4x256xf32> to vector<1x256xf32>
    %55 = vector.broadcast %53 : vector<8x1xf32> to vector<8x256xf32>
    %56 = vector.broadcast %54 : vector<1x256xf32> to vector<8x256xf32>
    %57 = arith.mulf %55, %56 : vector<8x256xf32>
    %58 = arith.addf %52, %57 : vector<8x256xf32>
    %c1_11 = arith.constant 1 : index
    %c0_12 = arith.constant 0 : index
    %c0_13 = arith.constant 0 : index
    %59 = vector.load %arg5[%c1_11, %c0_12, %c0_13] : memref<2x8x256xf32, #tpu.memory_space<vmem>>, vector<1x8x256xf32>
    %60 = vector.shape_cast %59 : vector<1x8x256xf32> to vector<8x256xf32>
    %61 = vector.shape_cast %58 : vector<8x256xf32> to vector<1x8x256xf32>
    tpu.vector_store %arg5[%c1_11, %c0_12, %c0_13], %61 {strides = array<i32>} : memref<2x8x256xf32, #tpu.memory_space<vmem>>, vector<1x8x256xf32>,
    return
  }
  func.func @transform_0(%arg0: i32, %arg1: i32) -> (i32, i32, i32) {
    %c0_i32 = arith.constant 0 : i32
    %c0_i32_0 = arith.constant 0 : i32
    return %arg0, %c0_i32, %arg1 : i32, i32, i32
  }
  func.func @transform_1(%arg0: i32, %arg1: i32) -> (i32, i32) {
    %c0_i32 = arith.constant 0 : i32
    %c0_i32_0 = arith.constant 0 : i32
    %c0_i32_1 = arith.constant 0 : i32
    return %c0_i32, %c0_i32_0 : i32, i32
  }
  func.func @transform_2(%arg0: i32, %arg1: i32) -> (i32, i32) {
    %c0_i32 = arith.constant 0 : i32
    %c0_i32_0 = arith.constant 0 : i32
    %c0_i32_1 = arith.constant 0 : i32
    return %c0_i32, %c0_i32_0 : i32, i32
  }
  func.func @transform_3(%arg0: i32, %arg1: i32) -> (i32, i32, i32) {
    %c0_i32 = arith.constant 0 : i32
    %c0_i32_0 = arith.constant 0 : i32
    return %arg0, %c0_i32, %arg1 : i32, i32, i32
  }
}

</mosaic_0001>

<llo_original>
// kernel: tpu_custom_call.1
$region0: #{tpu_custom_call.1}
  #allocation0 [shape = 'u32[]', space=smem, size = 0x4, offset = 0x4, fixed_abs, tag = 'smem constant byte address 0x4 - core index']
  #allocation1 [shape = 'u32[72,128]{1,0:T(1,128)}', space=vmem, size = 0x9000, scoped, tag = 'internal scratch']
  %s0 = inlined_call_operand.vmem [shape: f32[2,4,256], index: 0, kind: input, shape index: {}]
  %s1 = inlined_call_operand.vmem [shape: f32[8,4], index: 1, kind: input, shape index: {}]
  %s2 = inlined_call_operand.vmem [shape: f32[8,1], index: 2, kind: input, shape index: {}]
  %s3 = inlined_call_operand.hbm [shape: f32[2,8,256], index: 3, kind: output, shape index: {}]
  %s4 = sld [smem:[#allocation0]]
  $region22: #{tpu_custom_call.1} parent=0
    _
  %s6 = ssub.s32 1, %s4
  %s7 = scalar_select 0, %s6, %s4
  $region1: #{tpu_custom_call.1} parent=0
    #allocation2 [shape = 'u8[16384]{0}', space=vmem, size = 0x4000, scoped, tag = 'output window, operand 0, single buffered']
    #allocation3 [shape = 's32[1]{0}', space=sflag, size = 0x4, scoped, tag = 'scoped memory for tpu_custom_call.1']
    %8 = vsyncpa [#allocation3], 0
    // Predicated region
    $region2: #{tpu_custom_call.1} parent=1 // pred_check
      _
    $region3: #{tpu_custom_call.1} parent=1 // pred_check_branch
      %10 = sbr.rel (0) target = $region5
    $region4: #{tpu_custom_call.1} parent=1 // pred_region
      _
    $region5: #{tpu_custom_call.1} parent=1 // pred_fallthru
      _
    // Predicated region
    $region6: #{tpu_custom_call.1} parent=1 // pred_check
      _
    $region7: #{tpu_custom_call.1} parent=1 // pred_check_branch
      %12 = sbr.rel (0) target = $region9
    $region8: #{tpu_custom_call.1} parent=1 // pred_region
      _
    $region9: #{tpu_custom_call.1} parent=1 // pred_fallthru
      _
    // Predicated region
    $region10: #{tpu_custom_call.1} parent=1 // pred_check
      _
    $region11: #{tpu_custom_call.1} parent=1 // pred_check_branch
      %14 = sbr.rel (0) target = $region13
    $region12: #{tpu_custom_call.1} parent=1 // pred_region
      _
    $region13: #{tpu_custom_call.1} parent=1 // pred_fallthru
      _
    %v15 = vld [vmem:[%s1] sm:$0xff]
    %v16 = vld [vmem:[%s2] sm:$0xff]
    %v17 = vld [vmem:[%s0] sm:$0xff]
    %19 = vset.pattern.permute.xlu0 0
    %20 = vperm.xlu0 %19, %v15
    %v21 = vpop.permute.xlu0 %20
    %v24 = vperm.slane %v17, 0
    %v25 = vperm.slane %v17, 4
    %v28 = vperm.slane %v24, 0
    %v29 = vperm.slane %v25, 0
    %v30 = vmul.f32 %v21, %v28
    %v31 = vmul.f32 %v21, %v29
    %33 = vset.pattern.permute.xlu0 0
    %34 = vperm.xlu0 %33, %v16
    %v35 = vpop.permute.xlu0 %34
    %v37 = vadd.f32 %v35, %v30
    %v38 = vadd.f32 %v35, %v31
    %39 = vset.pattern.permute.xlu0 1
    %40 = vperm.xlu0 %39, %v15
    %v41 = vpop.permute.xlu0 %40
    %v43 = vperm.slane %v17, 1
    %v44 = vperm.slane %v17, 5
    %v47 = vperm.slane %v43, 1
    %v48 = vperm.slane %v44, 1
    %v49 = vmul.f32 %v41, %v47
    %v50 = vmul.f32 %v41, %v48
    %v51 = vadd.f32 %v37, %v49
    %v52 = vadd.f32 %v38, %v50
    %53 = vset.pattern.permute.xlu0 2
    %54 = vperm.xlu0 %53, %v15
    %v55 = vpop.permute.xlu0 %54
    %v57 = vperm.slane %v17, 2
    %v58 = vperm.slane %v17, 6
    %v61 = vperm.slane %v57, 2
    %v62 = vperm.slane %v58, 2
    %v63 = vmul.f32 %v55, %v61
    %v64 = vmul.f32 %v55, %v62
    %v65 = vadd.f32 %v51, %v63
    %v66 = vadd.f32 %v52, %v64
    %67 = vset.pattern.permute.xlu0 3
    %68 = vperm.xlu0 %67, %v15
    %v69 = vpop.permute.xlu0 %68
    %v71 = vperm.slane %v17, 3
    %v72 = vperm.slane %v17, 7
    %v75 = vperm.slane %v71, 3
    %v76 = vperm.slane %v72, 3
    %v77 = vmul.f32 %v69, %v75
    %v78 = vmul.f32 %v69, %v76
    %v79 = vadd.f32 %v65, %v77
    %v80 = vadd.f32 %v66, %v78
    %81 = vst [vmem:[#allocation2] sm:$0xff] %v79
    %82 = vst [vmem:[#allocation2 + $0x8] sm:$0xff] %v80
    %s83 = scalar_lea.vmem %s0, 8
    %v84 = vld [vmem:[%s83] sm:$0xff]
    %v86 = vperm.slane %v84, 0
    %v87 = vperm.slane %v84, 4
    %v90 = vperm.slane %v86, 0
    %v91 = vperm.slane %v87, 0
    %v92 = vmul.f32 %v21, %v90
    %v93 = vmul.f32 %v21, %v91
    %v94 = vadd.f32 %v35, %v92
    %v95 = vadd.f32 %v35, %v93
    %v96 = vperm.slane %v84, 1
    %v97 = vperm.slane %v84, 5
    %v100 = vperm.slane %v96, 1
    %v101 = vperm.slane %v97, 1
    %v102 = vmul.f32 %v41, %v100
    %v103 = vmul.f32 %v41, %v101
    %v104 = vadd.f32 %v94, %v102
    %v105 = vadd.f32 %v95, %v103
    %v106 = vperm.slane %v84, 2
    %v107 = vperm.slane %v84, 6
    %v110 = vperm.slane %v106, 2
    %v111 = vperm.slane %v107, 2
    %v112 = vmul.f32 %v55, %v110
    %v113 = vmul.f32 %v55, %v111
    %v114 = vadd.f32 %v104, %v112
    %v115 = vadd.f32 %v105, %v113
    %v116 = vperm.slane %v84, 3
    %v117 = vperm.slane %v84, 7
    %v120 = vperm.slane %v116, 3
    %v121 = vperm.slane %v117, 3
    %v122 = vmul.f32 %v69, %v120
    %v123 = vmul.f32 %v69, %v121
    %v124 = vadd.f32 %v114, %v122
    %v125 = vadd.f32 %v115, %v123
    %s126 = scalar_lea.vmem [#allocation2], 16
    %127 = vst [vmem:[%s126] sm:$0xff] %v124
    %128 = vst [vmem:[%s126 + $0x8] sm:$0xff] %v125
    // Predicated region
    $region14: #{tpu_custom_call.1} parent=1 // pred_check
      _
    $region15: #{tpu_custom_call.1} parent=1 // pred_check_branch
      %130 = sbr.rel (0) target = $region17
    $region16: #{tpu_custom_call.1} parent=1 // pred_region
      %132 = vsyncadd [#allocation3], 0
      %s133 = sshll.u32 [#allocation2], 4
      %s134 = int_to_ptr.vmem [resolvable:$true] %s133
      %s135 = sshll.u32 %s3, 4
      %s136 = int_to_ptr.hbm [resolvable:$true] %s135
      %141 = dma.vmem_to_hbm [thread:$0]  %s134, 512, %s136, [#allocation3], 256, 256, 16
    $region17: #{tpu_custom_call.1} parent=1 // pred_fallthru
      _
    // Predicated region
    $region18: #{tpu_custom_call.1} parent=1 // pred_check
      _
    $region19: #{tpu_custom_call.1} parent=1 // pred_check_branch
      %143 = sbr.rel (0) target = $region21
    $region20: #{tpu_custom_call.1} parent=1 // pred_region
      %145 = dma.done [#allocation3], 512
    $region21: #{tpu_custom_call.1} parent=1 // pred_fallthru
      _
    %146 = vsyncpa [#allocation3], 1

</llo_original>
